<compile_context>
chip_gen: v5e
topology: v5e:2x2
jax: 0.10.0
libtpu: 0.0.40
codegen_flags: <defaults>
</compile_context>

<pallas_src>
import functools

import jax
import jax.numpy as jnp
from jax.experimental import pallas as pl
from jax.experimental.pallas import tpu as pltpu


_DEFAULT_VMEM_BYTES = 64 * 1024 * 1024   # v7x-safe fallback
_ROW_CAP = 8192                          # rows per tile (review: raise to ~8192)


def _round_up(x, m):
    return ((x + m - 1) // m) * m


def _vmem_capacity_bytes():
    try:
        return int(pltpu.get_tpu_info().vmem_capacity_bytes)
    except Exception:
        return _DEFAULT_VMEM_BYTES


def _choose_tiles(B, D, itemsize, per_buffer_bytes):
    """Pick (row_tile, col_tile): biggest DMA tiles that fit the VMEM budget."""
    # Sublane quantum keeps blocks aligned for f32 (8) / bf16 (16) packing.
    quantum = 8 * max(1, 4 // itemsize)

    # Lane (feature) tiling only if a full-width tile can't hold >=256 rows.
    td = D
    min_rows = 256
    if D > 128 and D * itemsize * min_rows > per_buffer_bytes:
        td = (per_buffer_bytes // (min_rows * itemsize)) // 128 * 128
        td = max(td, 128)
        td = min(td, D)

    tb = per_buffer_bytes // max(td * itemsize, 1)
    tb = (tb // quantum) * quantum
    tb = max(tb, quantum)
    tb = min(tb, _ROW_CAP)
    tb = min(tb, _round_up(B, quantum))
    return tb, td


def _dcloss_kernel(o_ref, t_ref, so_ref, st_ref, ss_ref, *,
                   total_rows, tiles_per_split, mask_possible):
    """Accumulate lane/sublane-wise partial sums into the output refs."""
    c = pl.program_id(0)        # core-split index
    bj = pl.program_id(2)       # batch-tile index within the split (reduction)
    tb, td = o_ref.shape

    @pl.when(bj == 0)
    def _init():
        so_ref[...] = jnp.zeros_like(so_ref)
        st_ref[...] = jnp.zeros_like(st_ref)
        ss_ref[...] = jnp.zeros_like(ss_ref)

    o = o_ref[...].astype(jnp.float32)
    t = t_ref[...].astype(jnp.float32)

    def accumulate(o_v, t_v):
        # (tb, td) -> (tb//8, 8, td): groups of whole vregs, so the axis-0 sum
        # is pure VALU work; the sublane collapse is deferred to the wrapper.
        o8 = o_v.reshape(tb // 8, 8, td)
        t8 = t_v.reshape(tb // 8, 8, td)
        so_ref[...] += jnp.sum(o8, axis=0)[None]
        st_ref[...] += jnp.sum(t8, axis=0)[None]
        ss_ref[...] += jnp.sum(t8 * t8, axis=0)[None]

    if not mask_possible:
        accumulate(o, t)
    else:
        row_start = (c * tiles_per_split + bj) * tb
        needs_mask = row_start + tb > total_rows

        @pl.when(jnp.logical_not(needs_mask))
        def _full():
            accumulate(o, t)

        @pl.when(needs_mask)
        def _ragged():
            rows = jax.lax.broadcasted_iota(jnp.int32, (tb, 1), 0) + row_start
            valid = rows < total_rows
            accumulate(jnp.where(valid, o, 0.0), jnp.where(valid, t, 0.0))


def dc_loss(output: jax.Array, target: jax.Array, *,
            block_rows=None, block_cols=None, use_pallas=None) -> jax.Array:
    """Pallas implementation of DCLoss.forward. Returns a scalar float32."""
    assert output.shape == target.shape, "output/target must have same shape"
    assert output.ndim == 2, "expected (batch, features) inputs"
    B, D = output.shape
    itemsize = max(jnp.dtype(output.dtype).itemsize,
                   jnp.dtype(target.dtype).itemsize)

    if use_pallas is None:
        # Below ~2 MiB of HBM traffic the launch overhead dominates; let XLA fuse.
        use_pallas = (2 * B * D * itemsize) >= (2 << 20)
    if not use_pallas:
        o = output.astype(jnp.float32)
        t = target.astype(jnp.float32)
        return jnp.mean((jnp.mean(t, 0) - jnp.mean(o, 0)) ** 2) / (
            jnp.mean(t * t) + 1e-05)

    # Generation-aware VMEM budget: 3/8 of capacity for the 2 inputs x 2
    # pipeline buffers (24 MiB on v7x, 48 MiB on v5e/v6e).
    vmem_cap = _vmem_capacity_bytes()
    input_budget = (vmem_cap * 3) // 8
    per_buffer = input_budget // 4
    tb, td = _choose_tiles(B, D, itemsize, per_buffer)
    if block_rows is not None:
        quantum = 8 * max(1, 4 // itemsize)
        tb = int(min(_round_up(block_rows, quantum), _round_up(B, quantum)))
    if block_cols is not None:
        td = int(min(block_cols, D))

    b_tiles = pl.cdiv(B, tb)
    d_tiles = pl.cdiv(D, td)
    num_splits = 2 if b_tiles >= 2 else 1      # feeds both TensorCores on v7x
    tiles_per_split = pl.cdiv(b_tiles, num_splits)
    grid = (num_splits, d_tiles, tiles_per_split)

    # Masking needed if the last tile is ragged or a split has a clamped
    # (duplicate) tile; otherwise the mask branch is not even compiled.
    mask_possible = (B % tb != 0) or (b_tiles % num_splits != 0)

    kernel = functools.partial(
        _dcloss_kernel, total_rows=B, tiles_per_split=tiles_per_split,
        mask_possible=mask_possible)

    def in_idx(c, dj, bj):
        t_idx = jnp.minimum(c * tiles_per_split + bj, b_tiles - 1)
        return (t_idx, dj)

    def out_idx(c, dj, bj):
        return (c, 0, dj)

    part_shape = jax.ShapeDtypeStruct((num_splits, 8, D), jnp.float32)
    part_spec = pl.BlockSpec((1, 8, td), out_idx)

    vmem_limit = int(max(32 << 20,
                         min(vmem_cap - (8 << 20), input_budget + (8 << 20))))

    cost = pl.CostEstimate(
        flops=6 * B * D,
        transcendentals=0,
        bytes_accessed=2 * B * D * itemsize + 3 * num_splits * 8 * D * 4)

    so, st, ss = pl.pallas_call(
        kernel,
        out_shape=(part_shape, part_shape, part_shape),
        grid=grid,
        in_specs=[pl.BlockSpec((tb, td), in_idx),
                  pl.BlockSpec((tb, td), in_idx)],
        out_specs=(part_spec, part_spec, part_spec),
        compiler_params=pltpu.CompilerParams(
            dimension_semantics=("parallel", "parallel", "arbitrary"),
            vmem_limit_bytes=vmem_limit),
        cost_estimate=cost,
    )(output, target)

    # Tiny cross-split / cross-sublane finalize (XLA fuses it).
    sum_o = jnp.sum(so, axis=(0, 1))     # (D,)
    sum_t = jnp.sum(st, axis=(0, 1))     # (D,)
    sum_sq = jnp.sum(ss)                 # scalar
    inv_b = 1.0 / float(B)
    numer = jnp.mean(((sum_t - sum_o) * inv_b) ** 2)
    energy = sum_sq / float(B * D) + 1e-05
    return (numer / energy).astype(jnp.float32)


if __name__ == "__main__":
    key = jax.random.PRNGKey(0)
    keys = jax.random.split(key, 8)

    def ref_loss(o, t):
        o = o.astype(jnp.float32)
        t = t.astype(jnp.float32)
        return jnp.mean((jnp.mean(t, 0) - jnp.mean(o, 0)) ** 2) / (
            jnp.mean(t * t) + 1e-05)

    def check(o, t, got, rtol=1e-4, atol=1e-6):
        want = ref_loss(o, t)
        assert jnp.allclose(got, want, rtol=rtol, atol=atol), (got, want)

    # 1) Multi-tile path: ragged last tile, 2-way split, masked last step only.
    o1 = jax.random.normal(keys[0], (1000, 128), jnp.float32)
    t1 = jax.random.normal(keys[1], (1000, 128), jnp.float32)
    l1 = dc_loss(o1, t1, block_rows=128, use_pallas=True)
    jax.block_until_ready(l1)
    check(o1, t1, l1)

    # 2) Single full-extent block, small feature dim.
    o2 = jax.random.normal(keys[2], (64, 32), jnp.float32)
    t2 = jax.random.normal(keys[3], (64, 32), jnp.float32)
    l2 = dc_loss(o2, t2, use_pallas=True)
    jax.block_until_ready(l2)
    check(o2, t2, l2)

    # 3) bf16 inputs (upcast to f32 in-kernel; half the HBM traffic).
    o3 = jax.random.normal(keys[4], (512, 256), jnp.float32).astype(jnp.bfloat16)
    t3 = jax.random.normal(keys[5], (512, 256), jnp.float32).astype(jnp.bfloat16)
    l3 = dc_loss(o3, t3, block_rows=128, use_pallas=True)
    jax.block_until_ready(l3)
    check(o3, t3, l3, rtol=2e-3, atol=1e-5)

    # 4) Feature-dim (lane) tiling path: D=384 split into 128-wide blocks.
    o4 = jax.random.normal(keys[6], (256, 384), jnp.float32)
    t4 = jax.random.normal(keys[7], (256, 384), jnp.float32)
    l4 = dc_loss(o4, t4, block_rows=64, block_cols=128, use_pallas=True)
    jax.block_until_ready(l4)
    check(o4, t4, l4)

    # 5) Tiny-input fallback (pure jnp; XLA fuses the reduction).
    l5 = dc_loss(o2[:8], t2[:8])
    jax.block_until_ready(l5)
    check(o2[:8], t2[:8], l5, rtol=1e-5)

    print("KERNEL_OK")
</pallas_src>

<mosaic_0001>
module attributes {stable_mosaic.version = 11 : i64} {
  func.func @_dcloss_kernel(%arg0: i32, %arg1: i32, %arg2: i32, %arg3: memref<128x128xf32, #tpu.memory_space<vmem>>, %arg4: memref<128x128xf32, #tpu.memory_space<vmem>>, %arg5: memref<1x8x128xf32, #tpu.memory_space<vmem>>, %arg6: memref<1x8x128xf32, #tpu.memory_space<vmem>>, %arg7: memref<1x8x128xf32, #tpu.memory_space<vmem>>) attributes {dimension_semantics = [#tpu.dimension_semantics<parallel>, #tpu.dimension_semantics<parallel>, #tpu.dimension_semantics<arbitrary>], iteration_bounds = array<i64: 2, 1, 4>, scalar_prefetch = 0 : i64, scratch_operands = 0 : i64, tpu.core_type = #tpu.core_type<tc>, window_params = [{transform_indices = @transform_0, window_bounds = array<i64: 128, 128>}, {transform_indices = @transform_1, window_bounds = array<i64: 128, 128>}, {transform_indices = @transform_2, window_bounds = array<i64: 1, 8, 128>}, {transform_indices = @transform_3, window_bounds = array<i64: 1, 8, 128>}, {transform_indices = @transform_4, window_bounds = array<i64: 1, 8, 128>}]} {
    %c0_i32 = arith.constant 0 : i32
    %0 = arith.cmpi eq, %arg2, %c0_i32 : i32
    %1 = arith.extui %0 : i1 to i32
    %c0_i32_0 = arith.constant 0 : i32
    %2 = arith.cmpi ne, %1, %c0_i32_0 : i32
    scf.if %2 {
      %cst = arith.constant 0.000000e+00 : f32
      %15 = vector.broadcast %cst : f32 to vector<1x8x128xf32>
      %c0_7 = arith.constant 0 : index
      %c0_8 = arith.constant 0 : index
      %c0_9 = arith.constant 0 : index
      %16 = vector.load %arg5[%c0_7, %c0_8, %c0_9] : memref<1x8x128xf32, #tpu.memory_space<vmem>>, vector<1x8x128xf32>
      tpu.vector_store %arg5[%c0_7, %c0_8, %c0_9], %15 {strides = array<i32>} : memref<1x8x128xf32, #tpu.memory_space<vmem>>, vector<1x8x128xf32>,
      %cst_10 = arith.constant 0.000000e+00 : f32
      %17 = vector.broadcast %cst_10 : f32 to vector<1x8x128xf32>
      %c0_11 = arith.constant 0 : index
      %c0_12 = arith.constant 0 : index
      %c0_13 = arith.constant 0 : index
      %18 = vector.load %arg6[%c0_11, %c0_12, %c0_13] : memref<1x8x128xf32, #tpu.memory_space<vmem>>, vector<1x8x128xf32>
      tpu.vector_store %arg6[%c0_11, %c0_12, %c0_13], %17 {strides = array<i32>} : memref<1x8x128xf32, #tpu.memory_space<vmem>>, vector<1x8x128xf32>,
      %cst_14 = arith.constant 0.000000e+00 : f32
      %19 = vector.broadcast %cst_14 : f32 to vector<1x8x128xf32>
      %c0_15 = arith.constant 0 : index
      %c0_16 = arith.constant 0 : index
      %c0_17 = arith.constant 0 : index
      %20 = vector.load %arg7[%c0_15, %c0_16, %c0_17] : memref<1x8x128xf32, #tpu.memory_space<vmem>>, vector<1x8x128xf32>
      tpu.vector_store %arg7[%c0_15, %c0_16, %c0_17], %19 {strides = array<i32>} : memref<1x8x128xf32, #tpu.memory_space<vmem>>, vector<1x8x128xf32>,
    } else {
    }
    %c0 = arith.constant 0 : index
    %c0_1 = arith.constant 0 : index
    %3 = vector.load %arg3[%c0, %c0_1] : memref<128x128xf32, #tpu.memory_space<vmem>>, vector<128x128xf32>
    %c0_2 = arith.constant 0 : index
    %c0_3 = arith.constant 0 : index
    %4 = vector.load %arg4[%c0_2, %c0_3] : memref<128x128xf32, #tpu.memory_space<vmem>>, vector<128x128xf32>
    %c4_i32 = arith.constant 4 : i32
    %5 = arith.muli %arg0, %c4_i32 : i32
    %6 = arith.addi %5, %arg2 : i32
    %c128_i32 = arith.constant 128 : i32
    %7 = arith.muli %6, %c128_i32 : i32
    %c128_i32_4 = arith.constant 128 : i32
    %8 = arith.addi %7, %c128_i32_4 : i32
    %c1000_i32 = arith.constant 1000 : i32
    %9 = arith.cmpi sgt, %8, %c1000_i32 : i32
    %true = arith.constant true
    %10 = arith.xori %9, %true : i1
    %11 = arith.extui %10 : i1 to i32
    %c0_i32_5 = arith.constant 0 : i32
    %12 = arith.cmpi ne, %11, %c0_i32_5 : i32
    scf.if %12 {
      %15 = vector.shape_cast %3 : vector<128x128xf32> to vector<16x8x128xf32>
      %16 = vector.shape_cast %4 : vector<128x128xf32> to vector<16x8x128xf32>
      %c0_7 = arith.constant 0 : index
      %c0_8 = arith.constant 0 : index
      %c0_9 = arith.constant 0 : index
      %17 = vector.load %arg5[%c0_7, %c0_8, %c0_9] : memref<1x8x128xf32, #tpu.memory_space<vmem>>, vector<1x8x128xf32>
      %cst = arith.constant dense<0.000000e+00> : vector<8x128xf32>
      %18 = vector.multi_reduction <add>, %15, %cst [0] : vector<16x8x128xf32> to vector<8x128xf32>
      %19 = vector.shape_cast %18 : vector<8x128xf32> to vector<1x8x128xf32>
      %20 = arith.addf %17, %19 : vector<1x8x128xf32>
      %c0_10 = arith.constant 0 : index
      %c0_11 = arith.constant 0 : index
      %c0_12 = arith.constant 0 : index
      %21 = vector.load %arg5[%c0_10, %c0_11, %c0_12] : memref<1x8x128xf32, #tpu.memory_space<vmem>>, vector<1x8x128xf32>
      tpu.vector_store %arg5[%c0_10, %c0_11, %c0_12], %20 {strides = array<i32>} : memref<1x8x128xf32, #tpu.memory_space<vmem>>, vector<1x8x128xf32>,
      %c0_13 = arith.constant 0 : index
      %c0_14 = arith.constant 0 : index
      %c0_15 = arith.constant 0 : index
      %22 = vector.load %arg6[%c0_13, %c0_14, %c0_15] : memref<1x8x128xf32, #tpu.memory_space<vmem>>, vector<1x8x128xf32>
      %cst_16 = arith.constant dense<0.000000e+00> : vector<8x128xf32>
      %23 = vector.multi_reduction <add>, %16, %cst_16 [0] : vector<16x8x128xf32> to vector<8x128xf32>
      %24 = vector.shape_cast %23 : vector<8x128xf32> to vector<1x8x128xf32>
      %25 = arith.addf %22, %24 : vector<1x8x128xf32>
      %c0_17 = arith.constant 0 : index
      %c0_18 = arith.constant 0 : index
      %c0_19 = arith.constant 0 : index
      %26 = vector.load %arg6[%c0_17, %c0_18, %c0_19] : memref<1x8x128xf32, #tpu.memory_space<vmem>>, vector<1x8x128xf32>
      tpu.vector_store %arg6[%c0_17, %c0_18, %c0_19], %25 {strides = array<i32>} : memref<1x8x128xf32, #tpu.memory_space<vmem>>, vector<1x8x128xf32>,
      %c0_20 = arith.constant 0 : index
      %c0_21 = arith.constant 0 : index
      %c0_22 = arith.constant 0 : index
      %27 = vector.load %arg7[%c0_20, %c0_21, %c0_22] : memref<1x8x128xf32, #tpu.memory_space<vmem>>, vector<1x8x128xf32>
      %28 = arith.mulf %16, %16 : vector<16x8x128xf32>
      %cst_23 = arith.constant dense<0.000000e+00> : vector<8x128xf32>
      %29 = vector.multi_reduction <add>, %28, %cst_23 [0] : vector<16x8x128xf32> to vector<8x128xf32>
      %30 = vector.shape_cast %29 : vector<8x128xf32> to vector<1x8x128xf32>
      %31 = arith.addf %27, %30 : vector<1x8x128xf32>
      %c0_24 = arith.constant 0 : index
      %c0_25 = arith.constant 0 : index
      %c0_26 = arith.constant 0 : index
      %32 = vector.load %arg7[%c0_24, %c0_25, %c0_26] : memref<1x8x128xf32, #tpu.memory_space<vmem>>, vector<1x8x128xf32>
      tpu.vector_store %arg7[%c0_24, %c0_25, %c0_26], %31 {strides = array<i32>} : memref<1x8x128xf32, #tpu.memory_space<vmem>>, vector<1x8x128xf32>,
    } else {
    }
    %13 = arith.extui %9 : i1 to i32
    %c0_i32_6 = arith.constant 0 : i32
    %14 = arith.cmpi ne, %13, %c0_i32_6 : i32
    scf.if %14 {
      %15 = tpu.iota {dimensions = array<i32: 0>} : vector<128x1xi32>
      %16 = vector.broadcast %7 : i32 to vector<128x1xi32>
      %17 = arith.addi %15, %16 : vector<128x1xi32>
      %c1000_i32_7 = arith.constant 1000 : i32
      %18 = vector.broadcast %c1000_i32_7 : i32 to vector<128x1xi32>
      %19 = arith.cmpi slt, %17, %18 : vector<128x1xi32>
      %cst = arith.constant 0.000000e+00 : f32
      %20 = vector.shape_cast %19 : vector<128x1xi1> to vector<128x1xi1>
      %21 = vector.broadcast %20 : vector<128x1xi1> to vector<128x128xi1>
      %22 = vector.broadcast %cst : f32 to vector<128x128xf32>
      %23 = arith.select %21, %3, %22 : vector<128x128xi1>, vector<128x128xf32>
      %cst_8 = arith.constant 0.000000e+00 : f32
      %24 = vector.shape_cast %19 : vector<128x1xi1> to vector<128x1xi1>
      %25 = vector.broadcast %24 : vector<128x1xi1> to vector<128x128xi1>
      %26 = vector.broadcast %cst_8 : f32 to vector<128x128xf32>
      %27 = arith.select %25, %4, %26 : vector<128x128xi1>, vector<128x128xf32>
      %28 = vector.shape_cast %23 : vector<128x128xf32> to vector<16x8x128xf32>
      %29 = vector.shape_cast %27 : vector<128x128xf32> to vector<16x8x128xf32>
      %c0_9 = arith.constant 0 : index
      %c0_10 = arith.constant 0 : index
      %c0_11 = arith.constant 0 : index
      %30 = vector.load %arg5[%c0_9, %c0_10, %c0_11] : memref<1x8x128xf32, #tpu.memory_space<vmem>>, vector<1x8x128xf32>
      %cst_12 = arith.constant dense<0.000000e+00> : vector<8x128xf32>
      %31 = vector.multi_reduction <add>, %28, %cst_12 [0] : vector<16x8x128xf32> to vector<8x128xf32>
      %32 = vector.shape_cast %31 : vector<8x128xf32> to vector<1x8x128xf32>
      %33 = arith.addf %30, %32 : vector<1x8x128xf32>
      %c0_13 = arith.constant 0 : index
      %c0_14 = arith.constant 0 : index
      %c0_15 = arith.constant 0 : index
      %34 = vector.load %arg5[%c0_13, %c0_14, %c0_15] : memref<1x8x128xf32, #tpu.memory_space<vmem>>, vector<1x8x128xf32>
      tpu.vector_store %arg5[%c0_13, %c0_14, %c0_15], %33 {strides = array<i32>} : memref<1x8x128xf32, #tpu.memory_space<vmem>>, vector<1x8x128xf32>,
      %c0_16 = arith.constant 0 : index
      %c0_17 = arith.constant 0 : index
      %c0_18 = arith.constant 0 : index
      %35 = vector.load %arg6[%c0_16, %c0_17, %c0_18] : memref<1x8x128xf32, #tpu.memory_space<vmem>>, vector<1x8x128xf32>
      %cst_19 = arith.constant dense<0.000000e+00> : vector<8x128xf32>
      %36 = vector.multi_reduction <add>, %29, %cst_19 [0] : vector<16x8x128xf32> to vector<8x128xf32>
      %37 = vector.shape_cast %36 : vector<8x128xf32> to vector<1x8x128xf32>
      %38 = arith.addf %35, %37 : vector<1x8x128xf32>
      %c0_20 = arith.constant 0 : index
      %c0_21 = arith.constant 0 : index
      %c0_22 = arith.constant 0 : index
      %39 = vector.load %arg6[%c0_20, %c0_21, %c0_22] : memref<1x8x128xf32, #tpu.memory_space<vmem>>, vector<1x8x128xf32>
      tpu.vector_store %arg6[%c0_20, %c0_21, %c0_22], %38 {strides = array<i32>} : memref<1x8x128xf32, #tpu.memory_space<vmem>>, vector<1x8x128xf32>,
      %c0_23 = arith.constant 0 : index
      %c0_24 = arith.constant 0 : index
      %c0_25 = arith.constant 0 : index
      %40 = vector.load %arg7[%c0_23, %c0_24, %c0_25] : memref<1x8x128xf32, #tpu.memory_space<vmem>>, vector<1x8x128xf32>
      %41 = arith.mulf %29, %29 : vector<16x8x128xf32>
      %cst_26 = arith.constant dense<0.000000e+00> : vector<8x128xf32>
      %42 = vector.multi_reduction <add>, %41, %cst_26 [0] : vector<16x8x128xf32> to vector<8x128xf32>
      %43 = vector.shape_cast %42 : vector<8x128xf32> to vector<1x8x128xf32>
      %44 = arith.addf %40, %43 : vector<1x8x128xf32>
      %c0_27 = arith.constant 0 : index
      %c0_28 = arith.constant 0 : index
      %c0_29 = arith.constant 0 : index
      %45 = vector.load %arg7[%c0_27, %c0_28, %c0_29] : memref<1x8x128xf32, #tpu.memory_space<vmem>>, vector<1x8x128xf32>
      tpu.vector_store %arg7[%c0_27, %c0_28, %c0_29], %44 {strides = array<i32>} : memref<1x8x128xf32, #tpu.memory_space<vmem>>, vector<1x8x128xf32>,
    } else {
    }
    return
  }
  func.func @transform_0(%arg0: i32, %arg1: i32, %arg2: i32) -> (i32, i32) {
    %c4_i32 = arith.constant 4 : i32
    %0 = arith.muli %arg0, %c4_i32 : i32
    %1 = arith.addi %0, %arg2 : i32
    %c7_i32 = arith.constant 7 : i32
    %2 = arith.minsi %1, %c7_i32 : i32
    %c0_i32 = arith.constant 0 : i32
    return %2, %arg1 : i32, i32
  }
  func.func @transform_1(%arg0: i32, %arg1: i32, %arg2: i32) -> (i32, i32) {
    %c4_i32 = arith.constant 4 : i32
    %0 = arith.muli %arg0, %c4_i32 : i32
    %1 = arith.addi %0, %arg2 : i32
    %c7_i32 = arith.constant 7 : i32
    %2 = arith.minsi %1, %c7_i32 : i32
    %c0_i32 = arith.constant 0 : i32
    return %2, %arg1 : i32, i32
  }
  func.func @transform_2(%arg0: i32, %arg1: i32, %arg2: i32) -> (i32, i32, i32) {
    %c0_i32 = arith.constant 0 : i32
    %c0_i32_0 = arith.constant 0 : i32
    return %arg0, %c0_i32, %arg1 : i32, i32, i32
  }
  func.func @transform_3(%arg0: i32, %arg1: i32, %arg2: i32) -> (i32, i32, i32) {
    %c0_i32 = arith.constant 0 : i32
    %c0_i32_0 = arith.constant 0 : i32
    return %arg0, %c0_i32, %arg1 : i32, i32, i32
  }
  func.func @transform_4(%arg0: i32, %arg1: i32, %arg2: i32) -> (i32, i32, i32) {
    %c0_i32 = arith.constant 0 : i32
    %c0_i32_0 = arith.constant 0 : i32
    return %arg0, %c0_i32, %arg1 : i32, i32, i32
  }
}

</mosaic_0001>

<llo_original>
// kernel: tpu_custom_call.1
$region0: #{tpu_custom_call.1}
  #allocation0 [shape = 'u32[]', space=smem, size = 0x4, offset = 0x4, fixed_abs, tag = 'smem constant byte address 0x4 - core index']
  #allocation1 [shape = 'u32[72,128]{1,0:T(1,128)}', space=vmem, size = 0x9000, scoped, tag = 'internal scratch']
  %s0 = inlined_call_operand.hbm [shape: f32[1000,128], index: 0, kind: input, shape index: {}]
  %s1 = inlined_call_operand.hbm [shape: f32[1000,128], index: 1, kind: input, shape index: {}]
  %s2 = inlined_call_operand.hbm [shape: f32[2,8,128], index: 2, kind: output, shape index: {0}]
  %s3 = inlined_call_operand.hbm [shape: f32[2,8,128], index: 3, kind: output, shape index: {1}]
  %s4 = inlined_call_operand.hbm [shape: f32[2,8,128], index: 4, kind: output, shape index: {2}]
  %5 = xla_tuple %s2, %s3, %s4
  %s6 = sld [smem:[#allocation0]]
  $region77: #{tpu_custom_call.1} parent=0
    _
  %s8 = ssub.s32 1, %s6
  %s9 = scalar_select 0, %s8, %s6
  $region1: #{tpu_custom_call.1} parent=0
    #allocation2 [shape = 'u8[131072]{0}', space=vmem, size = 0x20000, scoped, tag = 'input window, operand 0']
    #allocation3 [shape = 's32[2]{0}', space=sflag, size = 0x8, scoped, tag = 'scoped memory for tpu_custom_call.1']
    #allocation4 [shape = 's32[2]{0}', space=sflag, size = 0x8, scoped, tag = 'scoped memory for tpu_custom_call.1']
    #allocation5 [shape = 'u8[131072]{0}', space=vmem, size = 0x20000, scoped, tag = 'input window, operand 1']
    #allocation6 [shape = 's32[2]{0}', space=sflag, size = 0x8, scoped, tag = 'scoped memory for tpu_custom_call.1']
    #allocation7 [shape = 'u8[8192]{0}', space=vmem, size = 0x2000, scoped, tag = 'output window, operand 0']
    #allocation8 [shape = 'u8[8192]{0}', space=vmem, size = 0x2000, scoped, tag = 'output window, operand 1']
    #allocation9 [shape = 's32[2]{0}', space=sflag, size = 0x8, scoped, tag = 'scoped memory for tpu_custom_call.1']
    #allocation10 [shape = 'u8[8192]{0}', space=vmem, size = 0x2000, scoped, tag = 'output window, operand 2']
    %10 = vsyncpa [#allocation3], 0
    %s11 = scalar_lea.sflag [#allocation3], 1
    %12 = vsyncpa %s11, 0
    %13 = vsyncpa [#allocation6], 0
    %s14 = scalar_lea.sflag [#allocation6], 1
    %15 = vsyncpa %s14, 0
    %16 = vsyncpa [#allocation4], 0
    %s17 = scalar_lea.sflag [#allocation4], 1
    %18 = vsyncpa %s17, 0
    %19 = vsyncpa [#allocation9], 0
    %s20 = scalar_lea.sflag [#allocation9], 1
    %21 = vsyncpa %s20, 0
    loop: start=0, step=1, limit=10
    $region2: #{tpu_custom_call.1} parent=1 // loop_pre_header
      _
    $region3: #{tpu_custom_call.1} parent=1 // loop_header
      %s23 = sphi 0, %s27
      %p24 = scmp.ge.s32.totalorder %s23, 10
      %s30 = sphi 0, %s49
      %s31 = sphi 0, %s45
      %s32 = sphi 0, %s41
      %s33 = sphi 0, %s30
      %s34 = sphi 0, %s31
      %s35 = sphi 0, %s32
      %s36 = sphi 0, %s33
      %s37 = sphi 0, %s34
      %s38 = sphi 0, %s35
      %s62 = sphi 0, %s64
      %s65 = sphi 0, %s62
      %s66 = sphi 0, %s65
      %s82 = sphi 0, %s66
      %s98 = sphi 0, %s100
      %s101 = sphi 0, %s98
      %s102 = sphi 0, %s101
      %s118 = sphi 0, %s102
      %s126 = sphi 0, %s128
      %s129 = sphi 0, %s126
      %s130 = sphi 0, %s129
      %s146 = sphi 0, %s130
      %s154 = sphi 0, %s156
      %s157 = sphi 0, %s154
      %s158 = sphi 0, %s157
      %s174 = sphi 0, %s158
      %s182 = sphi 0, %s184
      %s185 = sphi 0, %s182
      %s186 = sphi 0, %s185
      %s202 = sphi 0, %s186
    $region4: #{tpu_custom_call.1} parent=1 // loop_header_branch
      %26 = sbr.rel (%p24) target = $region8
    $region5: #{tpu_custom_call.1} parent=1 // loop_body
      %s28 = ssub.s32 %s23, 1
      %s29 = ssub.s32 %s23, 2
      %s39 = sadd.s32 1, %s32
      %p40 = scmp.ge.s32.totalorder %s39, 4
      %s41 = scalar_select %p40, 0, %s39
      %s42 = sadd.s32 1, %s31
      %s43 = scalar_select %p40, %s42, %s31
      %p44 = scmp.ge.s32.totalorder %s43, 1
      %s45 = scalar_select %p44, 0, %s43
      %s46 = sadd.s32 1, %s30
      %s47 = scalar_select %p44, %s46, %s30
      %p48 = scmp.ge.s32.totalorder %s47, 2
      %s49 = scalar_select %p48, 0, %s47
      %s50 = smul.u32 %s30, 4
      %s51 = sadd.s32 %s50, %s32
      %p52 = scmp.lt.s32.totalorder %s51, 7
      %s53 = scalar_select %p52, %s51, 7
      %s54 = smul.u32 %s49, 4
      %s55 = sadd.s32 %s54, %s41
      %p56 = scmp.lt.s32.totalorder %s55, 7
      %s57 = scalar_select %p56, %s55, 7
      %s58 = ssub.s32 %s53, %s57
      %s59 = ssub.s32 %s31, %s45
      %s60 = sor.u32 %s58, %s59
      %p61 = scmp.eq.s32.totalorder %s60, 0
      %s63 = sadd.s32 %s62, 1
      %s64 = scalar_select %p61, %s62, %s63
      %p67 = pneg %p61
      %p68 = scmp.eq.s32.totalorder %s23, 7
      %p69 = por %p67, %p68
      %p70 = scmp.ne.s32.totalorder %s62, %s65
      %p71 = scmp.eq.s32.totalorder %s23, 0
      %p72 = por %p70, %p71
      %p73 = scmp.ne.s32.totalorder %s62, %s65
      %p74 = scmp.eq.s32.totalorder %s28, 7
      %p75 = por %p73, %p74
      %p76 = scmp.ne.s32.totalorder %s65, %s66
      %p77 = scmp.eq.s32.totalorder %s28, 0
      %p78 = por %p76, %p77
      %p79 = scmp.ne.s32.totalorder %s65, %s66
      %p80 = scmp.eq.s32.totalorder %s29, 7
      %p81 = por %p79, %p80
      %p83 = scmp.ne.s32.totalorder %s66, %s82
      %p84 = scmp.eq.s32.totalorder %s29, 0
      %p85 = por %p83, %p84
      %s86 = smul.u32 %s30, 4
      %s87 = sadd.s32 %s86, %s32
      %p88 = scmp.lt.s32.totalorder %s87, 7
      %s89 = scalar_select %p88, %s87, 7
      %s90 = smul.u32 %s49, 4
      %s91 = sadd.s32 %s90, %s41
      %p92 = scmp.lt.s32.totalorder %s91, 7
      %s93 = scalar_select %p92, %s91, 7
      %s94 = ssub.s32 %s89, %s93
      %s95 = ssub.s32 %s31, %s45
      %s96 = sor.u32 %s94, %s95
      %p97 = scmp.eq.s32.totalorder %s96, 0
      %s99 = sadd.s32 %s98, 1
      %s100 = scalar_select %p97, %s98, %s99
      %p103 = pneg %p97
      %p104 = scmp.eq.s32.totalorder %s23, 7
      %p105 = por %p103, %p104
      %p106 = scmp.ne.s32.totalorder %s98, %s101
      %p107 = scmp.eq.s32.totalorder %s23, 0
      %p108 = por %p106, %p107
      %p109 = scmp.ne.s32.totalorder %s98, %s101
      %p110 = scmp.eq.s32.totalorder %s28, 7
      %p111 = por %p109, %p110
      %p112 = scmp.ne.s32.totalorder %s101, %s102
      %p113 = scmp.eq.s32.totalorder %s28, 0
      %p114 = por %p112, %p113
      %p115 = scmp.ne.s32.totalorder %s101, %s102
      %p116 = scmp.eq.s32.totalorder %s29, 7
      %p117 = por %p115, %p116
      %p119 = scmp.ne.s32.totalorder %s102, %s118
      %p120 = scmp.eq.s32.totalorder %s29, 0
      %p121 = por %p119, %p120
      %s122 = ssub.s32 %s30, %s49
      %s123 = ssub.s32 %s31, %s45
      %s124 = sor.u32 %s122, %s123
      %p125 = scmp.eq.s32.totalorder %s124, 0
      %s127 = sadd.s32 %s126, 1
      %s128 = scalar_select %p125, %s126, %s127
      %p131 = pneg %p125
      %p132 = scmp.eq.s32.totalorder %s23, 7
      %p133 = por %p131, %p132
      %p134 = scmp.ne.s32.totalorder %s126, %s129
      %p135 = scmp.eq.s32.totalorder %s23, 0
      %p136 = por %p134, %p135
      %p137 = scmp.ne.s32.totalorder %s126, %s129
      %p138 = scmp.eq.s32.totalorder %s28, 7
      %p139 = por %p137, %p138
      %p140 = scmp.ne.s32.totalorder %s129, %s130
      %p141 = scmp.eq.s32.totalorder %s28, 0
      %p142 = por %p140, %p141
      %p143 = scmp.ne.s32.totalorder %s129, %s130
      %p144 = scmp.eq.s32.totalorder %s29, 7
      %p145 = por %p143, %p144
      %p147 = scmp.ne.s32.totalorder %s130, %s146
      %p148 = scmp.eq.s32.totalorder %s29, 0
      %p149 = por %p147, %p148
      %s150 = ssub.s32 %s30, %s49
      %s151 = ssub.s32 %s31, %s45
      %s152 = sor.u32 %s150, %s151
      %p153 = scmp.eq.s32.totalorder %s152, 0
      %s155 = sadd.s32 %s154, 1
      %s156 = scalar_select %p153, %s154, %s155
      %p159 = pneg %p153
      %p160 = scmp.eq.s32.totalorder %s23, 7
      %p161 = por %p159, %p160
      %p162 = scmp.ne.s32.totalorder %s154, %s157
      %p163 = scmp.eq.s32.totalorder %s23, 0
      %p164 = por %p162, %p163
      %p165 = scmp.ne.s32.totalorder %s154, %s157
      %p166 = scmp.eq.s32.totalorder %s28, 7
      %p167 = por %p165, %p166
      %p168 = scmp.ne.s32.totalorder %s157, %s158
      %p169 = scmp.eq.s32.totalorder %s28, 0
      %p170 = por %p168, %p169
      %p171 = scmp.ne.s32.totalorder %s157, %s158
      %p172 = scmp.eq.s32.totalorder %s29, 7
      %p173 = por %p171, %p172
      %p175 = scmp.ne.s32.totalorder %s158, %s174
      %p176 = scmp.eq.s32.totalorder %s29, 0
      %p177 = por %p175, %p176
      %s178 = ssub.s32 %s30, %s49
      %s179 = ssub.s32 %s31, %s45
      %s180 = sor.u32 %s178, %s179
      %p181 = scmp.eq.s32.totalorder %s180, 0
      %s183 = sadd.s32 %s182, 1
      %s184 = scalar_select %p181, %s182, %s183
      %p187 = pneg %p181
      %p188 = scmp.eq.s32.totalorder %s23, 7
      %p189 = por %p187, %p188
      %p190 = scmp.ne.s32.totalorder %s182, %s185
      %p191 = scmp.eq.s32.totalorder %s23, 0
      %p192 = por %p190, %p191
      %p193 = scmp.ne.s32.totalorder %s182, %s185
      %p194 = scmp.eq.s32.totalorder %s28, 7
      %p195 = por %p193, %p194
      %p196 = scmp.ne.s32.totalorder %s185, %s186
      %p197 = scmp.eq.s32.totalorder %s28, 0
      %p198 = por %p196, %p197
      %p199 = scmp.ne.s32.totalorder %s185, %s186
      %p200 = scmp.eq.s32.totalorder %s29, 7
      %p201 = por %p199, %p200
      %p203 = scmp.ne.s32.totalorder %s186, %s202
      %p204 = scmp.eq.s32.totalorder %s29, 0
      %p205 = por %p203, %p204
      %p206 = scmp.le.s32.totalorder 1, %s23
      %p207 = scmp.lt.s32.totalorder %s23, 9
      %p208 = pnand %p206, %p207
      %p209 = pneg %p208
      // Predicated region
      $region9: #{tpu_custom_call.1} parent=5 // pred_check
        _
      $region10: #{tpu_custom_call.1} parent=5 // pred_check_branch
        %211 = sbr.rel (%p208) target = $region12
      $region11: #{tpu_custom_call.1} parent=5 // pred_region
        %s212 = ssub.s32 %s23, 1
      $region12: #{tpu_custom_call.1} parent=5 // pred_fallthru
        _
      %p213 = scmp.lt.s32.totalorder %s23, 8
      // Predicated region
      $region13: #{tpu_custom_call.1} parent=5 // pred_check
        %p214 = pneg %p213
      $region14: #{tpu_custom_call.1} parent=5 // pred_check_branch
        %216 = sbr.rel (%p214) target = $region16
      $region15: #{tpu_custom_call.1} parent=5 // pred_region
        // Predicated region
        $region17: #{tpu_custom_call.1} parent=15 // pred_check
          %p217 = pneg %p72
        $region18: #{tpu_custom_call.1} parent=15 // pred_check_branch
          %219 = sbr.rel (%p217) target = $region20
        $region19: #{tpu_custom_call.1} parent=15 // pred_region
          %s220 = sand.u32 %s62, 1
          %s221 = scalar_lea.sflag [#allocation3], %s220
          %s222 = sand.u32 %s62, 1
          %s223 = smul.addr %s222, 128
          %s224 = scalar_lea.vmem [#allocation2], %s223
          %s225 = smul.u32 %s30, 4
          %s226 = sadd.s32 %s225, %s32
          %p227 = scmp.lt.s32.totalorder %s226, 7
          %s228 = scalar_select %p227, %s226, 7
          %s229 = smul.u32 16, %s228
          %s230 = ssub.s32 125, %s229
          %p231 = scmp.lt.s32.totalorder %s230, 16
          %s232 = scalar_select %p231, %s230, 16
          %s233 = smul.u32 8, %s232
          %s234 = ssub.s32 128, %s233
          %s235 = sshll.u32 %s234, 4
          %236 = vsyncadd %s221, %s235
          %p237 = scmp.ne.s32.totalorder 0, %s233
          %s238 = sadd.s32 %s31, %s229
          %s239 = smul.addr %s238, 8
          %s240 = scalar_lea.hbm %s0, %s239
          %s241 = smul.u32 8, %s232
          %s242 = sshll.u32 %s240, 4
          %s243 = int_to_ptr.hbm [resolvable:$true] %s242
          %s244 = sshll.u32 %s224, 4
          %s245 = int_to_ptr.vmem [resolvable:$true] %s244
          %s246 = sshll.u32 %s241, 4
          %250 = dma.hbm_to_vmem [thread:$0]  (%p237), %s243, %s246, %s245, %s221, 128, 128, 8
        $region20: #{tpu_custom_call.1} parent=15 // pred_fallthru
          _
        // Predicated region
        $region21: #{tpu_custom_call.1} parent=15 // pred_check
          %p251 = pneg %p108
        $region22: #{tpu_custom_call.1} parent=15 // pred_check_branch
          %253 = sbr.rel (%p251) target = $region24
        $region23: #{tpu_custom_call.1} parent=15 // pred_region
          %s254 = sand.u32 %s98, 1
          %s255 = scalar_lea.sflag [#allocation6], %s254
          %s256 = sand.u32 %s98, 1
          %s257 = smul.addr %s256, 128
          %s258 = scalar_lea.vmem [#allocation5], %s257
          %s259 = smul.u32 %s30, 4
          %s260 = sadd.s32 %s259, %s32
          %p261 = scmp.lt.s32.totalorder %s260, 7
          %s262 = scalar_select %p261, %s260, 7
          %s263 = smul.u32 16, %s262
          %s264 = ssub.s32 125, %s263
          %p265 = scmp.lt.s32.totalorder %s264, 16
          %s266 = scalar_select %p265, %s264, 16
          %s267 = smul.u32 8, %s266
          %s268 = ssub.s32 128, %s267
          %s269 = sshll.u32 %s268, 4
          %270 = vsyncadd %s255, %s269
          %p271 = scmp.ne.s32.totalorder 0, %s267
          %s272 = sadd.s32 %s31, %s263
          %s273 = smul.addr %s272, 8
          %s274 = scalar_lea.hbm %s1, %s273
          %s275 = smul.u32 8, %s266
          %s276 = sshll.u32 %s274, 4
          %s277 = int_to_ptr.hbm [resolvable:$true] %s276
          %s278 = sshll.u32 %s258, 4
          %s279 = int_to_ptr.vmem [resolvable:$true] %s278
          %s280 = sshll.u32 %s275, 4
          %284 = dma.hbm_to_vmem [thread:$0]  (%p271), %s277, %s280, %s279, %s255, 128, 128, 8
        $region24: #{tpu_custom_call.1} parent=15 // pred_fallthru
          _
      $region16: #{tpu_custom_call.1} parent=5 // pred_fallthru
        _
      %p285 = scmp.le.s32.totalorder 1, %s23
      %p286 = scmp.lt.s32.totalorder %s23, 9
      %p287 = pnand %p285, %p286
      %p288 = pneg %p287
      // Predicated region
      $region25: #{tpu_custom_call.1} parent=5 // pred_check
        _
      $region26: #{tpu_custom_call.1} parent=5 // pred_check_branch
        %290 = sbr.rel (%p287) target = $region28
      $region27: #{tpu_custom_call.1} parent=5 // pred_region
        %s291 = ssub.s32 %s23, 1
        %s292 = sand.u32 %s65, 1
        %s293 = scalar_lea.sflag [#allocation3], %s292
        %s294 = sand.u32 %s65, 1
        %s295 = smul.addr %s294, 128
        %s296 = scalar_lea.vmem [#allocation2], %s295
        // Predicated region
        $region29: #{tpu_custom_call.1} parent=27 // pred_check
          %p297 = pneg %p78
        $region30: #{tpu_custom_call.1} parent=27 // pred_check_branch
          %299 = sbr.rel (%p297) target = $region32
        $region31: #{tpu_custom_call.1} parent=27 // pred_region
          %301 = dma.done %s293, 2048
        $region32: #{tpu_custom_call.1} parent=27 // pred_fallthru
          _
        %s302 = sand.u32 %s101, 1
        %s303 = scalar_lea.sflag [#allocation6], %s302
        %s304 = sand.u32 %s101, 1
        %s305 = smul.addr %s304, 128
        %s306 = scalar_lea.vmem [#allocation5], %s305
        // Predicated region
        $region33: #{tpu_custom_call.1} parent=27 // pred_check
          %p307 = pneg %p114
        $region34: #{tpu_custom_call.1} parent=27 // pred_check_branch
          %309 = sbr.rel (%p307) target = $region36
        $region35: #{tpu_custom_call.1} parent=27 // pred_region
          %311 = dma.done %s303, 2048
        $region36: #{tpu_custom_call.1} parent=27 // pred_fallthru
          _
        %s312 = sand.u32 %s65, 1
        %s313 = scalar_lea.sflag [#allocation3], %s312
        %s314 = sand.u32 %s65, 1
        %s315 = smul.addr %s314, 128
        %s316 = scalar_lea.vmem [#allocation2], %s315
        %p317 = pneg %p78
        %p318 = pneg %p75
        %s319 = sand.u32 %s101, 1
        %s320 = scalar_lea.sflag [#allocation6], %s319
        %s321 = sand.u32 %s101, 1
        %s322 = smul.addr %s321, 128
        %s323 = scalar_lea.vmem [#allocation5], %s322
        %p324 = pneg %p114
        %p325 = pneg %p111
        %p326 = pneg %p142
        %p327 = pneg %p139
        %s328 = sand.u32 %s129, 1
        %s329 = scalar_lea.sflag [#allocation4], %s328
        %s330 = sand.u32 %s129, 1
        %s331 = smul.addr %s330, 8
        %s332 = scalar_lea.vmem [#allocation7], %s331
        %p333 = pneg %p170
        %p334 = pneg %p167
        %s335 = sand.u32 %s28, 1
        %s336 = scalar_lea.sflag [#allocation9], %s335
        %s337 = sand.u32 %s157, 1
        %s338 = smul.addr %s337, 8
        %s339 = scalar_lea.vmem [#allocation8], %s338
        %p340 = pneg %p198
        %p341 = pneg %p195
        %s342 = sand.u32 %s28, 1
        %s343 = scalar_lea.sflag [#allocation9], %s342
        %s344 = sand.u32 %s185, 1
        %s345 = smul.addr %s344, 8
        %s346 = scalar_lea.vmem [#allocation10], %s345
        %s347 = smul.u32 %s33, 4
        %s348 = sadd.s32 %s347, %s35
        %p349 = scmp.lt.s32.totalorder %s348, 7
        %s350 = scalar_select %p349, %s348, 7
        %s351 = smul.u32 16, %s350
        %s352 = ssub.s32 125, %s351
        %p353 = scmp.lt.s32.totalorder %s352, 16
        %s354 = scalar_select %p353, %s352, 16
        %s355 = smul.u32 8, %s354
        %s356 = smul.u32 %s33, 4
        %s357 = sadd.s32 %s356, %s35
        %p358 = scmp.lt.s32.totalorder %s357, 7
        %s359 = scalar_select %p358, %s357, 7
        %s360 = smul.u32 16, %s359
        %s361 = ssub.s32 125, %s360
        %p362 = scmp.lt.s32.totalorder %s361, 16
        %s363 = scalar_select %p362, %s361, 16
        %s364 = smul.u32 8, %s363
        %p365 = scmp.eq.s32.totalorder %s35, 0
        // Predicated region
        $region37: #{tpu_custom_call.1} parent=27 // pred_check
          %p366 = pneg %p365
        $region38: #{tpu_custom_call.1} parent=27 // pred_check_branch
          %368 = sbr.rel (%p366) target = $region40
        $region39: #{tpu_custom_call.1} parent=27 // pred_region
          %369 = vst [vmem:[%s332] sm:$0xff] 0.0
          %370 = vst [vmem:[%s339] sm:$0xff] 0.0
          %371 = vst [vmem:[%s346] sm:$0xff] 0.0
        $region40: #{tpu_custom_call.1} parent=27 // pred_fallthru
          _
        %v372 = vld [vmem:[%s296] sm:$0xff]
        %v373 = vld [vmem:[%s296 + $0x8] sm:$0xff]
        %v374 = vld [vmem:[%s296 + $0x10] sm:$0xff]
        %v375 = vld [vmem:[%s296 + $0x18] sm:$0xff]
        %v376 = vld [vmem:[%s296 + $0x20] sm:$0xff]
        %v377 = vld [vmem:[%s296 + $0x28] sm:$0xff]
        %v378 = vld [vmem:[%s296 + $0x30] sm:$0xff]
        %v379 = vld [vmem:[%s296 + $0x38] sm:$0xff]
        %v380 = vld [vmem:[%s296 + $0x40] sm:$0xff]
        %v381 = vld [vmem:[%s296 + $0x48] sm:$0xff]
        %v382 = vld [vmem:[%s296 + $0x50] sm:$0xff]
        %v383 = vld [vmem:[%s296 + $0x58] sm:$0xff]
        %v384 = vld [vmem:[%s296 + $0x60] sm:$0xff]
        %v385 = vld [vmem:[%s296 + $0x68] sm:$0xff]
        %v386 = vld [vmem:[%s296 + $0x70] sm:$0xff]
        %v387 = vld [vmem:[%s296 + $0x78] sm:$0xff]
        %v388 = vld [vmem:[%s306] sm:$0xff]
        %v389 = vld [vmem:[%s306 + $0x8] sm:$0xff]
        %v390 = vld [vmem:[%s306 + $0x10] sm:$0xff]
        %v391 = vld [vmem:[%s306 + $0x18] sm:$0xff]
        %v392 = vld [vmem:[%s306 + $0x20] sm:$0xff]
        %v393 = vld [vmem:[%s306 + $0x28] sm:$0xff]
        %v394 = vld [vmem:[%s306 + $0x30] sm:$0xff]
        %v395 = vld [vmem:[%s306 + $0x38] sm:$0xff]
        %v396 = vld [vmem:[%s306 + $0x40] sm:$0xff]
        %v397 = vld [vmem:[%s306 + $0x48] sm:$0xff]
        %v398 = vld [vmem:[%s306 + $0x50] sm:$0xff]
        %v399 = vld [vmem:[%s306 + $0x58] sm:$0xff]
        %v400 = vld [vmem:[%s306 + $0x60] sm:$0xff]
        %v401 = vld [vmem:[%s306 + $0x68] sm:$0xff]
        %v402 = vld [vmem:[%s306 + $0x70] sm:$0xff]
        %v403 = vld [vmem:[%s306 + $0x78] sm:$0xff]
        %s404 = smul.u32 %s33, 4
        %s405 = sadd.s32 %s404, %s35
        %s406 = smul.u32 %s405, 128
        %s407 = sadd.s32 %s406, 128
        %p408 = scmp.gt.s32.totalorder %s407, 1000
        %p409 = scmp.le.s32.totalorder %s407, 1000
        // Predicated region
        $region41: #{tpu_custom_call.1} parent=27 // pred_check
          %p410 = pneg %p409
        $region42: #{tpu_custom_call.1} parent=27 // pred_check_branch
          %412 = sbr.rel (%p410) target = $region44
        $region43: #{tpu_custom_call.1} parent=27 // pred_region
          %v413 = vld [vmem:[%s332] sm:$0xff]
          %v414 = vadd.f32 %v372, %v373
          %v415 = vadd.f32 %v414, %v374
          %v416 = vadd.f32 %v415, %v375
          %v417 = vadd.f32 %v416, %v376
          %v418 = vadd.f32 %v417, %v377
          %v419 = vadd.f32 %v418, %v378
          %v420 = vadd.f32 %v419, %v379
          %v421 = vadd.f32 %v420, %v380
          %v422 = vadd.f32 %v421, %v381
          %v423 = vadd.f32 %v422, %v382
          %v424 = vadd.f32 %v423, %v383
          %v425 = vadd.f32 %v424, %v384
          %v426 = vadd.f32 %v425, %v385
          %v427 = vadd.f32 %v426, %v386
          %v428 = vadd.f32 %v427, %v387
          %v429 = vadd.f32 %v413, %v428
          %430 = vst [vmem:[%s332] sm:$0xff] %v429
          %v431 = vld [vmem:[%s339] sm:$0xff]
          %v432 = vadd.f32 %v388, %v389
          %v433 = vadd.f32 %v432, %v390
          %v434 = vadd.f32 %v433, %v391
          %v435 = vadd.f32 %v434, %v392
          %v436 = vadd.f32 %v435, %v393
          %v437 = vadd.f32 %v436, %v394
          %v438 = vadd.f32 %v437, %v395
          %v439 = vadd.f32 %v438, %v396
          %v440 = vadd.f32 %v439, %v397
          %v441 = vadd.f32 %v440, %v398
          %v442 = vadd.f32 %v441, %v399
          %v443 = vadd.f32 %v442, %v400
          %v444 = vadd.f32 %v443, %v401
          %v445 = vadd.f32 %v444, %v402
          %v446 = vadd.f32 %v445, %v403
          %v447 = vadd.f32 %v431, %v446
          %448 = vst [vmem:[%s339] sm:$0xff] %v447
          %v449 = vld [vmem:[%s346] sm:$0xff]
          %v450 = vmul.f32 %v388, %v388
          %v451 = vmul.f32 %v389, %v389
          %v452 = vmul.f32 %v390, %v390
          %v453 = vmul.f32 %v391, %v391
          %v454 = vmul.f32 %v392, %v392
          %v455 = vmul.f32 %v393, %v393
          %v456 = vmul.f32 %v394, %v394
          %v457 = vmul.f32 %v395, %v395
          %v458 = vmul.f32 %v396, %v396
          %v459 = vmul.f32 %v397, %v397
          %v460 = vmul.f32 %v398, %v398
          %v461 = vmul.f32 %v399, %v399
          %v462 = vmul.f32 %v400, %v400
          %v463 = vmul.f32 %v401, %v401
          %v464 = vmul.f32 %v402, %v402
          %v465 = vmul.f32 %v403, %v403
          %v466 = vadd.f32 %v450, %v451
          %v467 = vadd.f32 %v466, %v452
          %v468 = vadd.f32 %v467, %v453
          %v469 = vadd.f32 %v468, %v454
          %v470 = vadd.f32 %v469, %v455
          %v471 = vadd.f32 %v470, %v456
          %v472 = vadd.f32 %v471, %v457
          %v473 = vadd.f32 %v472, %v458
          %v474 = vadd.f32 %v473, %v459
          %v475 = vadd.f32 %v474, %v460
          %v476 = vadd.f32 %v475, %v461
          %v477 = vadd.f32 %v476, %v462
          %v478 = vadd.f32 %v477, %v463
          %v479 = vadd.f32 %v478, %v464
          %v480 = vadd.f32 %v479, %v465
          %v481 = vadd.f32 %v449, %v480
          %482 = vst [vmem:[%s346] sm:$0xff] %v481
        $region44: #{tpu_custom_call.1} parent=27 // pred_fallthru
          _
        // Predicated region
        $region45: #{tpu_custom_call.1} parent=27 // pred_check
          %p483 = pneg %p408
        $region46: #{tpu_custom_call.1} parent=27 // pred_check_branch
          %485 = sbr.rel (%p483) target = $region48
        $region47: #{tpu_custom_call.1} parent=27 // pred_region
          %v486 = vlaneseq
          %v487 = vshrl.u32 %v486, 7
          %v488 = vadd.s32 %v487, 8
          %v489 = vadd.s32 %v487, 16
          %v490 = vadd.s32 %v487, 24
          %v491 = vadd.s32 %v487, 32
          %v492 = vadd.s32 %v487, 40
          %v493 = vadd.s32 %v487, 48
          %v494 = vadd.s32 %v487, 56
          %v495 = vadd.s32 %v487, 64
          %v496 = vadd.s32 %v487, 72
          %v497 = vadd.s32 %v487, 80
          %v498 = vadd.s32 %v487, 88
          %v499 = vadd.s32 %v487, 96
          %v500 = vadd.s32 %v487, 104
          %v501 = vadd.s32 %v487, 112
          %v502 = vadd.s32 %v487, 120
          %v503 = vstv %s406
          %v504 = vadd.s32 %v487, %v503
          %v505 = vadd.s32 %v488, %v503
          %v506 = vadd.s32 %v489, %v503
          %v507 = vadd.s32 %v490, %v503
          %v508 = vadd.s32 %v491, %v503
          %v509 = vadd.s32 %v492, %v503
          %v510 = vadd.s32 %v493, %v503
          %v511 = vadd.s32 %v494, %v503
          %v512 = vadd.s32 %v495, %v503
          %v513 = vadd.s32 %v496, %v503
          %v514 = vadd.s32 %v497, %v503
          %v515 = vadd.s32 %v498, %v503
          %v516 = vadd.s32 %v499, %v503
          %v517 = vadd.s32 %v500, %v503
          %v518 = vadd.s32 %v501, %v503
          %v519 = vadd.s32 %v502, %v503
          %vm520 = vcmp.lt.s32.totalorder %v504, 1000
          %vm521 = vcmp.lt.s32.totalorder %v505, 1000
          %vm522 = vcmp.lt.s32.totalorder %v506, 1000
          %vm523 = vcmp.lt.s32.totalorder %v507, 1000
          %vm524 = vcmp.lt.s32.totalorder %v508, 1000
          %vm525 = vcmp.lt.s32.totalorder %v509, 1000
          %vm526 = vcmp.lt.s32.totalorder %v510, 1000
          %vm527 = vcmp.lt.s32.totalorder %v511, 1000
          %vm528 = vcmp.lt.s32.totalorder %v512, 1000
          %vm529 = vcmp.lt.s32.totalorder %v513, 1000
          %vm530 = vcmp.lt.s32.totalorder %v514, 1000
          %vm531 = vcmp.lt.s32.totalorder %v515, 1000
          %vm532 = vcmp.lt.s32.totalorder %v516, 1000
          %vm533 = vcmp.lt.s32.totalorder %v517, 1000
          %vm534 = vcmp.lt.s32.totalorder %v518, 1000
          %vm535 = vcmp.lt.s32.totalorder %v519, 1000
          %v536 = vsel %vm520, 1, 0
          %v537 = vsel %vm521, 1, 0
          %v538 = vsel %vm522, 1, 0
          %v539 = vsel %vm523, 1, 0
          %v540 = vsel %vm524, 1, 0
          %v541 = vsel %vm525, 1, 0
          %v542 = vsel %vm526, 1, 0
          %v543 = vsel %vm527, 1, 0
          %v544 = vsel %vm528, 1, 0
          %v545 = vsel %vm529, 1, 0
          %v546 = vsel %vm530, 1, 0
          %v547 = vsel %vm531, 1, 0
          %v548 = vsel %vm532, 1, 0
          %v549 = vsel %vm533, 1, 0
          %v550 = vsel %vm534, 1, 0
          %v551 = vsel %vm535, 1, 0
          %vm552 = vcmp.eq.s32.totalorder %v536, 1
          %vm553 = vcmp.eq.s32.totalorder %v537, 1
          %vm554 = vcmp.eq.s32.totalorder %v538, 1
          %vm555 = vcmp.eq.s32.totalorder %v539, 1
          %vm556 = vcmp.eq.s32.totalorder %v540, 1
          %vm557 = vcmp.eq.s32.totalorder %v541, 1
          %vm558 = vcmp.eq.s32.totalorder %v542, 1
          %vm559 = vcmp.eq.s32.totalorder %v543, 1
          %vm560 = vcmp.eq.s32.totalorder %v544, 1
          %vm561 = vcmp.eq.s32.totalorder %v545, 1
          %vm562 = vcmp.eq.s32.totalorder %v546, 1
          %vm563 = vcmp.eq.s32.totalorder %v547, 1
          %vm564 = vcmp.eq.s32.totalorder %v548, 1
          %vm565 = vcmp.eq.s32.totalorder %v549, 1
          %vm566 = vcmp.eq.s32.totalorder %v550, 1
          %vm567 = vcmp.eq.s32.totalorder %v551, 1
          %v568 = vsel %vm552, %v372, 0.0
          %v569 = vsel %vm553, %v373, 0.0
          %v570 = vsel %vm554, %v374, 0.0
          %v571 = vsel %vm555, %v375, 0.0
          %v572 = vsel %vm556, %v376, 0.0
          %v573 = vsel %vm557, %v377, 0.0
          %v574 = vsel %vm558, %v378, 0.0
          %v575 = vsel %vm559, %v379, 0.0
          %v576 = vsel %vm560, %v380, 0.0
          %v577 = vsel %vm561, %v381, 0.0
          %v578 = vsel %vm562, %v382, 0.0
          %v579 = vsel %vm563, %v383, 0.0
          %v580 = vsel %vm564, %v384, 0.0
          %v581 = vsel %vm565, %v385, 0.0
          %v582 = vsel %vm566, %v386, 0.0
          %v583 = vsel %vm567, %v387, 0.0
          %v584 = vsel %vm552, %v388, 0.0
          %v585 = vsel %vm553, %v389, 0.0
          %v586 = vsel %vm554, %v390, 0.0
          %v587 = vsel %vm555, %v391, 0.0
          %v588 = vsel %vm556, %v392, 0.0
          %v589 = vsel %vm557, %v393, 0.0
          %v590 = vsel %vm558, %v394, 0.0
          %v591 = vsel %vm559, %v395, 0.0
          %v592 = vsel %vm560, %v396, 0.0
          %v593 = vsel %vm561, %v397, 0.0
          %v594 = vsel %vm562, %v398, 0.0
          %v595 = vsel %vm563, %v399, 0.0
          %v596 = vsel %vm564, %v400, 0.0
          %v597 = vsel %vm565, %v401, 0.0
          %v598 = vsel %vm566, %v402, 0.0
          %v599 = vsel %vm567, %v403, 0.0
          %v600 = vld [vmem:[%s332] sm:$0xff]
          %v601 = vadd.f32 %v568, %v569
          %v602 = vadd.f32 %v601, %v570
          %v603 = vadd.f32 %v602, %v571
          %v604 = vadd.f32 %v603, %v572
          %v605 = vadd.f32 %v604, %v573
          %v606 = vadd.f32 %v605, %v574
          %v607 = vadd.f32 %v606, %v575
          %v608 = vadd.f32 %v607, %v576
          %v609 = vadd.f32 %v608, %v577
          %v610 = vadd.f32 %v609, %v578
          %v611 = vadd.f32 %v610, %v579
          %v612 = vadd.f32 %v611, %v580
          %v613 = vadd.f32 %v612, %v581
          %v614 = vadd.f32 %v613, %v582
          %v615 = vadd.f32 %v614, %v583
          %v616 = vadd.f32 %v600, %v615
          %617 = vst [vmem:[%s332] sm:$0xff] %v616
          %v618 = vld [vmem:[%s339] sm:$0xff]
          %v619 = vadd.f32 %v584, %v585
          %v620 = vadd.f32 %v619, %v586
          %v621 = vadd.f32 %v620, %v587
          %v622 = vadd.f32 %v621, %v588
          %v623 = vadd.f32 %v622, %v589
          %v624 = vadd.f32 %v623, %v590
          %v625 = vadd.f32 %v624, %v591
          %v626 = vadd.f32 %v625, %v592
          %v627 = vadd.f32 %v626, %v593
          %v628 = vadd.f32 %v627, %v594
          %v629 = vadd.f32 %v628, %v595
          %v630 = vadd.f32 %v629, %v596
          %v631 = vadd.f32 %v630, %v597
          %v632 = vadd.f32 %v631, %v598
          %v633 = vadd.f32 %v632, %v599
          %v634 = vadd.f32 %v618, %v633
          %635 = vst [vmem:[%s339] sm:$0xff] %v634
          %v636 = vld [vmem:[%s346] sm:$0xff]
          %v637 = vmul.f32 %v584, %v584
          %v638 = vmul.f32 %v585, %v585
          %v639 = vmul.f32 %v586, %v586
          %v640 = vmul.f32 %v587, %v587
          %v641 = vmul.f32 %v588, %v588
          %v642 = vmul.f32 %v589, %v589
          %v643 = vmul.f32 %v590, %v590
          %v644 = vmul.f32 %v591, %v591
          %v645 = vmul.f32 %v592, %v592
          %v646 = vmul.f32 %v593, %v593
          %v647 = vmul.f32 %v594, %v594
          %v648 = vmul.f32 %v595, %v595
          %v649 = vmul.f32 %v596, %v596
          %v650 = vmul.f32 %v597, %v597
          %v651 = vmul.f32 %v598, %v598
          %v652 = vmul.f32 %v599, %v599
          %v653 = vadd.f32 %v637, %v638
          %v654 = vadd.f32 %v653, %v639
          %v655 = vadd.f32 %v654, %v640
          %v656 = vadd.f32 %v655, %v641
          %v657 = vadd.f32 %v656, %v642
          %v658 = vadd.f32 %v657, %v643
          %v659 = vadd.f32 %v658, %v644
          %v660 = vadd.f32 %v659, %v645
          %v661 = vadd.f32 %v660, %v646
          %v662 = vadd.f32 %v661, %v647
          %v663 = vadd.f32 %v662, %v648
          %v664 = vadd.f32 %v663, %v649
          %v665 = vadd.f32 %v664, %v650
          %v666 = vadd.f32 %v665, %v651
          %v667 = vadd.f32 %v666, %v652
          %v668 = vadd.f32 %v636, %v667
          %669 = vst [vmem:[%s346] sm:$0xff] %v668
        $region48: #{tpu_custom_call.1} parent=27 // pred_fallthru
          _
        %s670 = sand.u32 %s129, 1
        %s671 = scalar_lea.sflag [#allocation4], %s670
        %s672 = sand.u32 %s129, 1
        %s673 = smul.addr %s672, 8
        %s674 = scalar_lea.vmem [#allocation7], %s673
        %s675 = sand.u32 %s28, 1
        %s676 = scalar_lea.sflag [#allocation9], %s675
        %s677 = sand.u32 %s157, 1
        %s678 = smul.addr %s677, 8
        %s679 = scalar_lea.vmem [#allocation8], %s678
        %s680 = sand.u32 %s28, 1
        %s681 = scalar_lea.sflag [#allocation9], %s680
        %s682 = sand.u32 %s185, 1
        %s683 = smul.addr %s682, 8
        %s684 = scalar_lea.vmem [#allocation10], %s683
        // Predicated region
        $region49: #{tpu_custom_call.1} parent=27 // pred_check
          %p685 = pneg %p139
        $region50: #{tpu_custom_call.1} parent=27 // pred_check_branch
          %687 = sbr.rel (%p685) target = $region52
        $region51: #{tpu_custom_call.1} parent=27 // pred_region
          %689 = vsyncadd %s671, 0
          %s690 = sadd.s32 %s34, %s33
          %s691 = smul.addr %s690, 8
          %s692 = scalar_lea.hbm %s2, %s691
          %s694 = sshll.u32 %s674, 4
          %s695 = int_to_ptr.vmem [resolvable:$true] %s694
          %s696 = sshll.u32 %s692, 4
          %s697 = int_to_ptr.hbm [resolvable:$true] %s696
          %699 = dma.vmem_to_hbm [thread:$0]  %s695, 128, %s697, %s671
        $region52: #{tpu_custom_call.1} parent=27 // pred_fallthru
          _
        // Predicated region
        $region53: #{tpu_custom_call.1} parent=27 // pred_check
          %p700 = pneg %p167
        $region54: #{tpu_custom_call.1} parent=27 // pred_check_branch
          %702 = sbr.rel (%p700) target = $region56
        $region55: #{tpu_custom_call.1} parent=27 // pred_region
          %704 = vsyncadd %s676, 0
          %s705 = sadd.s32 %s34, %s33
          %s706 = smul.addr %s705, 8
          %s707 = scalar_lea.hbm %s3, %s706
          %s709 = sshll.u32 %s679, 4
          %s710 = int_to_ptr.vmem [resolvable:$true] %s709
          %s711 = sshll.u32 %s707, 4
          %s712 = int_to_ptr.hbm [resolvable:$true] %s711
          %714 = dma.vmem_to_hbm [thread:$0]  %s710, 128, %s712, %s676
        $region56: #{tpu_custom_call.1} parent=27 // pred_fallthru
          _
        // Predicated region
        $region57: #{tpu_custom_call.1} parent=27 // pred_check
          %p715 = pneg %p195
        $region58: #{tpu_custom_call.1} parent=27 // pred_check_branch
          %717 = sbr.rel (%p715) target = $region60
        $region59: #{tpu_custom_call.1} parent=27 // pred_region
          %719 = vsyncadd %s681, 0
          %s720 = sadd.s32 %s34, %s33
          %s721 = smul.addr %s720, 8
          %s722 = scalar_lea.hbm %s4, %s721
          %s724 = sshll.u32 %s684, 4
          %s725 = int_to_ptr.vmem [resolvable:$true] %s724
          %s726 = sshll.u32 %s722, 4
          %s727 = int_to_ptr.hbm [resolvable:$true] %s726
          %729 = dma.vmem_to_hbm [thread:$0]  %s725, 128, %s727, %s681
        $region60: #{tpu_custom_call.1} parent=27 // pred_fallthru
          _
      $region28: #{tpu_custom_call.1} parent=5 // pred_fallthru
        _
      %p730 = scmp.le.s32.totalorder 2, %s23
      // Predicated region
      $region61: #{tpu_custom_call.1} parent=5 // pred_check
        %p731 = pneg %p730
      $region62: #{tpu_custom_call.1} parent=5 // pred_check_branch
        %733 = sbr.rel (%p731) target = $region64
      $region63: #{tpu_custom_call.1} parent=5 // pred_region
        %s734 = ssub.s32 %s23, 2
        // Predicated region
        $region65: #{tpu_custom_call.1} parent=63 // pred_check
          %p735 = pneg %p145
        $region66: #{tpu_custom_call.1} parent=63 // pred_check_branch
          %737 = sbr.rel (%p735) target = $region68
        $region67: #{tpu_custom_call.1} parent=63 // pred_region
          %s738 = sand.u32 %s130, 1
          %s739 = scalar_lea.sflag [#allocation4], %s738
          %s740 = sand.u32 %s130, 1
          %s741 = smul.addr %s740, 8
          %s742 = scalar_lea.vmem [#allocation7], %s741
          %744 = dma.done %s739, 128
        $region68: #{tpu_custom_call.1} parent=63 // pred_fallthru
          _
        // Predicated region
        $region69: #{tpu_custom_call.1} parent=63 // pred_check
          %p745 = pneg %p173
        $region70: #{tpu_custom_call.1} parent=63 // pred_check_branch
          %747 = sbr.rel (%p745) target = $region72
        $region71: #{tpu_custom_call.1} parent=63 // pred_region
          %s748 = sand.u32 %s29, 1
          %s749 = scalar_lea.sflag [#allocation9], %s748
          %s750 = sand.u32 %s158, 1
          %s751 = smul.addr %s750, 8
          %s752 = scalar_lea.vmem [#allocation8], %s751
          %754 = dma.done %s749, 128
        $region72: #{tpu_custom_call.1} parent=63 // pred_fallthru
          _
        // Predicated region
        $region73: #{tpu_custom_call.1} parent=63 // pred_check
          %p755 = pneg %p201
        $region74: #{tpu_custom_call.1} parent=63 // pred_check_branch
          %757 = sbr.rel (%p755) target = $region76
        $region75: #{tpu_custom_call.1} parent=63 // pred_region
          %s758 = sand.u32 %s29, 1
          %s759 = scalar_lea.sflag [#allocation9], %s758
          %s760 = sand.u32 %s186, 1
          %s761 = smul.addr %s760, 8
          %s762 = scalar_lea.vmem [#allocation10], %s761
          %764 = dma.done %s759, 128
        $region76: #{tpu_custom_call.1} parent=63 // pred_fallthru
          _
      $region64: #{tpu_custom_call.1} parent=5 // pred_fallthru
        _
    $region6: #{tpu_custom_call.1} parent=1 // loop_footer
      %s27 = sadd.s32 1, %s23
    $region7: #{tpu_custom_call.1} parent=1 // loop_footer_branch
      %22 = sbr.rel target = $region3
    $region8: #{tpu_custom_call.1} parent=1 // loop_exit
      _
    %765 = vsyncpa [#allocation3], 1
    %s766 = scalar_lea.sflag [#allocation3], 1
    %767 = vsyncpa %s766, 1
    %768 = vsyncpa [#allocation6], 1
    %s769 = scalar_lea.sflag [#allocation6], 1
    %770 = vsyncpa %s769, 1
    %771 = vsyncpa [#allocation4], 1
    %s772 = scalar_lea.sflag [#allocation4], 1
    %773 = vsyncpa %s772, 1
    %774 = vsyncpa [#allocation9], 1
    %s775 = scalar_lea.sflag [#allocation9], 1
    %776 = vsyncpa %s775, 1

</llo_original>
